<compile_context>
chip_gen: v7x
topology: tpu7x:2x2x1
jax: 0.10.0
libtpu: 0.0.40
codegen_flags: <defaults>
</compile_context>

<pallas_src>
import functools

import jax
import jax.numpy as jnp
import numpy as np
from jax import lax
from jax.experimental import pallas as pl
from jax.experimental.pallas import tpu as pltpu


def _lmf_kernel(logits_ref, target_ref, wt_ref, mt_ref, out_ref, *, gamma, s, n_rows):
    z = logits_ref[...].astype(jnp.float32)            # (TILE_N, C)
    tgt = target_ref[...]                               # (TILE_N, 1) int32
    w_t = wt_ref[...].astype(jnp.float32)               # (TILE_N, 1) weight[target]
    m_t = mt_ref[...].astype(jnp.float32)               # (TILE_N, 1) margin[target]
    tn, c = z.shape

    # Row validity from the static true batch size (no row padding in HBM).
    # Boundary blocks may hold garbage -> always SELECT by validity, never
    # multiply, so Inf/NaN in garbage rows cannot leak into the sums.
    row = pl.program_id(0) * tn + lax.broadcasted_iota(jnp.int32, (tn, 1), 0)
    valid = row < n_rows                                 # (TILE_N, 1) bool

    col = lax.broadcasted_iota(jnp.int32, (tn, c), 1)
    mask = col == tgt                                    # bool one-hot (no f32 cast)

    # target-class logit per row: the single remaining masked lane reduction
    z_t = jnp.sum(jnp.where(mask, z, 0.0), axis=1, keepdims=True)

    # one shared row-max; reused as LDAM stabilizer (m_t >= 0  =>  zl <= z)
    zmax = jnp.max(z, axis=1, keepdims=True)
    zs = z - zmax                                        # <= 0
    t_shift = z_t - zmax                                 # <= 0

    es = jnp.exp(zs)                                     # shared by focal & LDAM

    # ---------------- Focal: (1 - p)^gamma * (w_t * CE) ---------------------
    lse = jnp.log(jnp.sum(es, axis=1, keepdims=True))
    ce = lse - t_shift                                   # logsumexp(z) - z_t
    logp = w_t * ce
    p = jnp.exp(-logp)
    d = 1.0 - p
    g = float(gamma)
    mod = lax.integer_pow(d, int(g)) if g == int(g) else d ** g
    focal_rows = mod * logp                              # (TILE_N, 1)

    # ---------------- LDAM: CE of s*(z - onehot*m_t), never materialized ----
    # exp(s*zs) reuses es via integer_pow when s is integral (default s=5).
    s_f = float(s)
    if s_f == int(s_f) and 1 <= int(s_f) <= 64:
        exp_s = lax.integer_pow(es, int(s_f))
    else:
        exp_s = jnp.exp(s_f * zs)
    # non-target sum via select (no cancellation), then add the margined
    # target term:  sum_el = sum_{c != t} exp(s*zs_c) + exp(s*(t_shift - m_t))
    sum_el = jnp.sum(jnp.where(mask, 0.0, exp_s), axis=1, keepdims=True)
    sum_el = sum_el + jnp.exp(s_f * (t_shift - m_t))
    # CE = s*zmax + log(sum_el) - s*(z_t - m_t)
    ldam_rows = jnp.log(sum_el) - s_f * (t_shift - m_t)  # (TILE_N, 1)

    focal_sum = jnp.sum(jnp.where(valid, focal_rows, 0.0))
    ldam_sum = jnp.sum(jnp.where(valid, ldam_rows, 0.0))

    # lane-dense (8, 128) partial tile: [0,0] = focal partial, [0,1] = ldam
    lane = lax.broadcasted_iota(jnp.int32, (8, 128), 1)
    sub = lax.broadcasted_iota(jnp.int32, (8, 128), 0)
    first = sub == 0
    out_ref[...] = jnp.where(first & (lane == 0), focal_sum,
                             jnp.where(first & (lane == 1), ldam_sum, 0.0))


def _round_up(x, m):
    return ((x + m - 1) // m) * m


def _choose_tile_n(n, c, itemsize):
    # ~6 MiB per logits buffer; x2 double-buffering ~ 12 MiB -> safe inside the
    # scoped-VMEM defaults on v5e/v6e and within v7x's 64 MiB physical VMEM.
    budget_rows = max(8, (6 * 1024 * 1024) // max(1, c * itemsize))
    tile_n = max(8, min(_round_up(n, 8), (budget_rows // 8) * 8))
    # keep >= 4 grid steps when the batch allows it so the "parallel" grid axis
    # can shard across both v7x TensorCores (and pipeline on all generations).
    while tile_n > 8 and pl.cdiv(n, tile_n) < 4:
        tile_n = max(8, ((tile_n // 2 + 7) // 8) * 8)
    return tile_n


def lmf_loss(logits, target, cls_weight, m_list,
             alpha=0.2, beta=0.2, gamma=2, s=5, tile_n=None):
    n, c = logits.shape
    itemsize = logits.dtype.itemsize                     # bf16 inputs supported

    if tile_n is None:
        tile_n = _choose_tile_n(n, c, itemsize)
    num_tiles = pl.cdiv(n, tile_n)

    # Tiny per-row side inputs (8-12 bytes/row): gathered weights/margins and
    # the int32 targets.  The logits themselves are passed through untouched.
    tgt = target.astype(jnp.int32).reshape(n, 1)
    w_t = cls_weight.astype(jnp.float32)[target].reshape(n, 1)
    m_t = m_list.astype(jnp.float32)[target].reshape(n, 1)

    block_bytes = tile_n * c * itemsize
    needed = 2 * block_bytes + 2 * 3 * tile_n * 4 + 2 * 8 * 128 * 4
    vmem_limit = int(min(48 * 1024 * 1024, max(2 * needed, 8 * 1024 * 1024)))

    cost = pl.CostEstimate(
        flops=int(14 * n * c),
        transcendentals=int(n * c + 4 * n),
        bytes_accessed=int(n * c * itemsize + 12 * n + num_tiles * 8 * 128 * 4))

    kernel = functools.partial(_lmf_kernel, gamma=float(gamma), s=float(s), n_rows=n)
    partials = pl.pallas_call(
        kernel,
        out_shape=jax.ShapeDtypeStruct((num_tiles * 8, 128), jnp.float32),
        grid_spec=pltpu.PrefetchScalarGridSpec(
            num_scalar_prefetch=0,
            grid=(num_tiles,),
            in_specs=[
                pl.BlockSpec((tile_n, c), lambda i: (i, 0)),   # logits tile (true C)
                pl.BlockSpec((tile_n, 1), lambda i: (i, 0)),   # targets tile
                pl.BlockSpec((tile_n, 1), lambda i: (i, 0)),   # weight[target]
                pl.BlockSpec((tile_n, 1), lambda i: (i, 0)),   # margin[target]
            ],
            out_specs=pl.BlockSpec((8, 128), lambda i: (i, 0)),  # per-tile partials
        ),
        compiler_params=pltpu.CompilerParams(
            dimension_semantics=("parallel",),
            vmem_limit_bytes=vmem_limit),
        cost_estimate=cost,
    )(logits, tgt, w_t, m_t)

    # tiny final reduction over per-tile partials + true-N mean in plain JAX
    focal = jnp.sum(partials[:, 0]) / n
    ldam = jnp.sum(partials[:, 1]) / n
    return alpha * focal + beta * ldam


def lmf_loss_ref(logits, target, cls_weight, m_list,
                 alpha=0.2, beta=0.2, gamma=2, s=5):
    """Pure-JAX reference mirroring the PyTorch LMFLoss forward (default cfg)."""
    z = logits.astype(jnp.float32)
    n, c = z.shape
    onehot = jax.nn.one_hot(target, c, dtype=jnp.float32)
    logsm = jax.nn.log_softmax(z, axis=1)
    ce = -jnp.sum(onehot * logsm, axis=1)
    # focal: weighted CE per-sample (reduction='none'), then plain mean over N
    w_t = cls_weight[target]
    logp = w_t * ce
    p = jnp.exp(-logp)
    focal = jnp.mean((1.0 - p) ** gamma * logp)
    # LDAM: margin subtracted at true class, scaled by s, unweighted mean CE
    m_t = m_list[target][:, None]
    zl = s * (z - onehot * m_t)
    ce_l = -jnp.sum(onehot * jax.nn.log_softmax(zl, axis=1), axis=1)
    ldam = jnp.mean(ce_l)
    return alpha * focal + beta * ldam


def _make_case(key, n, c, max_m=0.8):
    k1, k2 = jax.random.split(key)
    logits = jax.random.normal(k1, (n, c), dtype=jnp.float32)
    target = jax.random.randint(k2, (n,), 0, c, dtype=jnp.int32)
    # deterministic imbalanced class counts -> per-class weights & LDAM margins
    cls_num_list = jnp.arange(1, c + 1, dtype=jnp.float32) * 10.0
    cls_weight = (jnp.sum(cls_num_list) / (c * cls_num_list)).astype(jnp.float32)
    m_list = 1.0 / jnp.sqrt(jnp.sqrt(cls_num_list))
    m_list = (m_list * (max_m / jnp.max(m_list))).astype(jnp.float32)
    return logits, target, cls_weight, m_list


if __name__ == "__main__":
    key = jax.random.PRNGKey(0)
    k_a, k_b = jax.random.split(key)

    # primary case: batch of 8 samples, 16 classes (aligned rows, C < 128)
    logits, target, cls_weight, m_list = _make_case(k_a, 8, 16)
    out = jax.block_until_ready(
        lmf_loss(logits, target, cls_weight, m_list, alpha=0.2, beta=0.2, gamma=2, s=5))
    ref = jax.block_until_ready(
        lmf_loss_ref(logits, target, cls_weight, m_list, alpha=0.2, beta=0.2, gamma=2, s=5))
    np.testing.assert_allclose(np.asarray(out), np.asarray(ref), rtol=2e-5, atol=1e-6)

    # ragged case: 13 rows / 10 classes exercises the boundary-block row
    # masking (no padding anywhere) and the multi-tile grid.
    logits2, target2, cls_weight2, m_list2 = _make_case(k_b, 13, 10)
    out2 = jax.block_until_ready(
        lmf_loss(logits2, target2, cls_weight2, m_list2, alpha=0.2, beta=0.2, gamma=2, s=5))
    ref2 = jax.block_until_ready(
        lmf_loss_ref(logits2, target2, cls_weight2, m_list2, alpha=0.2, beta=0.2, gamma=2, s=5))
    np.testing.assert_allclose(np.asarray(out2), np.asarray(ref2), rtol=2e-5, atol=1e-6)

    print("KERNEL_OK")
</pallas_src>

<mosaic_0001>
module attributes {stable_mosaic.version = 11 : i64} {
  func.func @_lmf_kernel(%arg0: i32, %arg1: memref<8x16xf32, #tpu.memory_space<vmem>>, %arg2: memref<8x1xi32, #tpu.memory_space<vmem>>, %arg3: memref<8x1xf32, #tpu.memory_space<vmem>>, %arg4: memref<8x1xf32, #tpu.memory_space<vmem>>, %arg5: memref<8x128xf32, #tpu.memory_space<vmem>>) attributes {dimension_semantics = [#tpu.dimension_semantics<parallel>], iteration_bounds = array<i64: 1>, scalar_prefetch = 0 : i64, scratch_operands = 0 : i64, tpu.core_type = #tpu.core_type<tc>, window_params = [{transform_indices = @transform_0, window_bounds = array<i64: 8, 16>}, {transform_indices = @transform_1, window_bounds = array<i64: 8, 1>}, {transform_indices = @transform_2, window_bounds = array<i64: 8, 1>}, {transform_indices = @transform_3, window_bounds = array<i64: 8, 1>}, {transform_indices = @transform_4, window_bounds = array<i64: 8, 128>}]} {
    %c0 = arith.constant 0 : index
    %c0_0 = arith.constant 0 : index
    %0 = vector.load %arg1[%c0, %c0_0] : memref<8x16xf32, #tpu.memory_space<vmem>>, vector<8x16xf32>
    %c0_1 = arith.constant 0 : index
    %c0_2 = arith.constant 0 : index
    %1 = vector.load %arg2[%c0_1, %c0_2] : memref<8x1xi32, #tpu.memory_space<vmem>>, vector<8x1xi32>
    %c0_3 = arith.constant 0 : index
    %c0_4 = arith.constant 0 : index
    %2 = vector.load %arg3[%c0_3, %c0_4] : memref<8x1xf32, #tpu.memory_space<vmem>>, vector<8x1xf32>
    %c0_5 = arith.constant 0 : index
    %c0_6 = arith.constant 0 : index
    %3 = vector.load %arg4[%c0_5, %c0_6] : memref<8x1xf32, #tpu.memory_space<vmem>>, vector<8x1xf32>
    %c8_i32 = arith.constant 8 : i32
    %4 = arith.muli %arg0, %c8_i32 : i32
    %5 = tpu.iota {dimensions = array<i32: 0>} : vector<8x1xi32>
    %6 = vector.broadcast %4 : i32 to vector<8x1xi32>
    %7 = arith.addi %6, %5 : vector<8x1xi32>
    %c8_i32_7 = arith.constant 8 : i32
    %8 = vector.broadcast %c8_i32_7 : i32 to vector<8x1xi32>
    %9 = arith.cmpi slt, %7, %8 : vector<8x1xi32>
    %10 = tpu.iota {dimensions = array<i32: 1>} : vector<8x16xi32>
    %11 = vector.broadcast %1 : vector<8x1xi32> to vector<8x16xi32>
    %12 = arith.cmpi eq, %10, %11 : vector<8x16xi32>
    %cst = arith.constant 0.000000e+00 : f32
    %13 = vector.broadcast %cst : f32 to vector<8x16xf32>
    %14 = arith.select %12, %0, %13 : vector<8x16xi1>, vector<8x16xf32>
    %cst_8 = arith.constant dense<0.000000e+00> : vector<8xf32>
    %15 = vector.multi_reduction <add>, %14, %cst_8 [1] : vector<8x16xf32> to vector<8xf32>
    %16 = vector.shape_cast %15 : vector<8xf32> to vector<8x1xf32>
    %cst_9 = arith.constant dense<0xFF800000> : vector<8xf32>
    %17 = vector.multi_reduction <maximumf>, %0, %cst_9 [1] : vector<8x16xf32> to vector<8xf32>
    %18 = vector.shape_cast %17 : vector<8xf32> to vector<8x1xf32>
    %19 = vector.broadcast %18 : vector<8x1xf32> to vector<8x16xf32>
    %20 = arith.subf %0, %19 : vector<8x16xf32>
    %21 = arith.subf %16, %18 : vector<8x1xf32>
    %22 = math.exp %20 : vector<8x16xf32>
    %cst_10 = arith.constant dense<0.000000e+00> : vector<8xf32>
    %23 = vector.multi_reduction <add>, %22, %cst_10 [1] : vector<8x16xf32> to vector<8xf32>
    %24 = vector.shape_cast %23 : vector<8xf32> to vector<8x1xf32>
    %25 = math.log %24 : vector<8x1xf32>
    %26 = arith.subf %25, %21 : vector<8x1xf32>
    %27 = arith.mulf %2, %26 : vector<8x1xf32>
    %cst_11 = arith.constant 0.000000e+00 : f32
    %28 = vector.broadcast %cst_11 : f32 to vector<8x1xf32>
    %29 = arith.subf %28, %27 : vector<8x1xf32>
    %30 = math.exp %29 : vector<8x1xf32>
    %cst_12 = arith.constant 1.000000e+00 : f32
    %31 = vector.broadcast %cst_12 : f32 to vector<8x1xf32>
    %32 = arith.subf %31, %30 : vector<8x1xf32>
    %33 = arith.mulf %32, %32 : vector<8x1xf32>
    %34 = arith.mulf %33, %27 : vector<8x1xf32>
    %35 = arith.mulf %22, %22 : vector<8x16xf32>
    %36 = arith.mulf %35, %35 : vector<8x16xf32>
    %37 = arith.mulf %22, %36 : vector<8x16xf32>
    %cst_13 = arith.constant 0.000000e+00 : f32
    %38 = vector.broadcast %cst_13 : f32 to vector<8x16xf32>
    %39 = arith.select %12, %38, %37 : vector<8x16xi1>, vector<8x16xf32>
    %cst_14 = arith.constant dense<0.000000e+00> : vector<8xf32>
    %40 = vector.multi_reduction <add>, %39, %cst_14 [1] : vector<8x16xf32> to vector<8xf32>
    %41 = vector.shape_cast %40 : vector<8xf32> to vector<8x1xf32>
    %42 = arith.subf %21, %3 : vector<8x1xf32>
    %cst_15 = arith.constant 5.000000e+00 : f32
    %43 = vector.broadcast %cst_15 : f32 to vector<8x1xf32>
    %44 = arith.mulf %43, %42 : vector<8x1xf32>
    %45 = math.exp %44 : vector<8x1xf32>
    %46 = arith.addf %41, %45 : vector<8x1xf32>
    %47 = math.log %46 : vector<8x1xf32>
    %48 = arith.subf %21, %3 : vector<8x1xf32>
    %cst_16 = arith.constant 5.000000e+00 : f32
    %49 = vector.broadcast %cst_16 : f32 to vector<8x1xf32>
    %50 = arith.mulf %49, %48 : vector<8x1xf32>
    %51 = arith.subf %47, %50 : vector<8x1xf32>
    %cst_17 = arith.constant 0.000000e+00 : f32
    %52 = vector.broadcast %cst_17 : f32 to vector<8x1xf32>
    %53 = arith.select %9, %34, %52 : vector<8x1xi1>, vector<8x1xf32>
    %54 = vector.shape_cast %53 : vector<8x1xf32> to vector<1x8x1xf32>
    %cst_18 = arith.constant dense<0.000000e+00> : vector<1xf32>
    %55 = vector.multi_reduction <add>, %54, %cst_18 [1, 2] : vector<1x8x1xf32> to vector<1xf32>
    %56 = vector.shape_cast %55 : vector<1xf32> to vector<1x1x1xf32>
    %57 = vector.extract %56[0, 0, 0] : f32 from vector<1x1x1xf32>
    %cst_19 = arith.constant 0.000000e+00 : f32
    %58 = vector.broadcast %cst_19 : f32 to vector<8x1xf32>
    %59 = arith.select %9, %51, %58 : vector<8x1xi1>, vector<8x1xf32>
    %60 = vector.shape_cast %59 : vector<8x1xf32> to vector<1x8x1xf32>
    %cst_20 = arith.constant dense<0.000000e+00> : vector<1xf32>
    %61 = vector.multi_reduction <add>, %60, %cst_20 [1, 2] : vector<1x8x1xf32> to vector<1xf32>
    %62 = vector.shape_cast %61 : vector<1xf32> to vector<1x1x1xf32>
    %63 = vector.extract %62[0, 0, 0] : f32 from vector<1x1x1xf32>
    %64 = tpu.iota {dimensions = array<i32: 1>} : vector<8x128xi32>
    %65 = tpu.iota {dimensions = array<i32: 0>} : vector<8x128xi32>
    %c0_i32 = arith.constant 0 : i32
    %66 = vector.broadcast %c0_i32 : i32 to vector<8x128xi32>
    %67 = arith.cmpi eq, %65, %66 : vector<8x128xi32>
    %c0_i32_21 = arith.constant 0 : i32
    %68 = vector.broadcast %c0_i32_21 : i32 to vector<8x128xi32>
    %69 = arith.cmpi eq, %64, %68 : vector<8x128xi32>
    %70 = arith.andi %67, %69 : vector<8x128xi1>
    %c1_i32 = arith.constant 1 : i32
    %71 = vector.broadcast %c1_i32 : i32 to vector<8x128xi32>
    %72 = arith.cmpi eq, %64, %71 : vector<8x128xi32>
    %73 = arith.andi %67, %72 : vector<8x128xi1>
    %cst_22 = arith.constant 0.000000e+00 : f32
    %74 = vector.broadcast %63 : f32 to vector<8x128xf32>
    %75 = vector.broadcast %cst_22 : f32 to vector<8x128xf32>
    %76 = arith.select %73, %74, %75 : vector<8x128xi1>, vector<8x128xf32>
    %77 = vector.broadcast %57 : f32 to vector<8x128xf32>
    %78 = arith.select %70, %77, %76 : vector<8x128xi1>, vector<8x128xf32>
    %c0_23 = arith.constant 0 : index
    %c0_24 = arith.constant 0 : index
    %79 = vector.load %arg5[%c0_23, %c0_24] : memref<8x128xf32, #tpu.memory_space<vmem>>, vector<8x128xf32>
    tpu.vector_store %arg5[%c0_23, %c0_24], %78 {strides = array<i32>} : memref<8x128xf32, #tpu.memory_space<vmem>>, vector<8x128xf32>,
    return
  }
  func.func @transform_0(%arg0: i32) -> (i32, i32) {
    %c0_i32 = arith.constant 0 : i32
    %c0_i32_0 = arith.constant 0 : i32
    return %arg0, %c0_i32 : i32, i32
  }
  func.func @transform_1(%arg0: i32) -> (i32, i32) {
    %c0_i32 = arith.constant 0 : i32
    %c0_i32_0 = arith.constant 0 : i32
    return %arg0, %c0_i32 : i32, i32
  }
  func.func @transform_2(%arg0: i32) -> (i32, i32) {
    %c0_i32 = arith.constant 0 : i32
    %c0_i32_0 = arith.constant 0 : i32
    return %arg0, %c0_i32 : i32, i32
  }
  func.func @transform_3(%arg0: i32) -> (i32, i32) {
    %c0_i32 = arith.constant 0 : i32
    %c0_i32_0 = arith.constant 0 : i32
    return %arg0, %c0_i32 : i32, i32
  }
  func.func @transform_4(%arg0: i32) -> (i32, i32) {
    %c0_i32 = arith.constant 0 : i32
    %c0_i32_0 = arith.constant 0 : i32
    return %arg0, %c0_i32 : i32, i32
  }
}

</mosaic_0001>

<llo_original>
// kernel: tpu_custom_call.1
$region0: #{tpu_custom_call.1}
  #allocation0 [shape = 'u32[]', space=smem, size = 0x4, offset = 0x4, fixed_abs, tag = 'smem constant byte address 0x4 - core index']
  #allocation1 [shape = 'u32[144,128]{1,0:T(1,128)}', space=vmem, size = 0x12000, scoped, tag = 'internal scratch']
  %s0 = inlined_call_operand.vmem [shape: f32[8,16], index: 0, kind: input, shape index: {}]
  %s1 = inlined_call_operand.vmem [shape: s32[8,1], index: 1, kind: input, shape index: {}]
  %s2 = inlined_call_operand.vmem [shape: f32[8,1], index: 2, kind: input, shape index: {}]
  %s3 = inlined_call_operand.vmem [shape: f32[8,1], index: 3, kind: input, shape index: {}]
  %s4 = inlined_call_operand.hbm [shape: f32[8,128], index: 4, kind: output, shape index: {}]
  %s5 = sld [smem:[#allocation0]]
  $region26: #{tpu_custom_call.1} parent=0
    _
  %s7 = ssub.s32 1, %s5
  %s8 = scalar_select 0, %s7, %s5
  $region1: #{tpu_custom_call.1} parent=0
    #allocation2 [shape = 'u8[4096]{0}', space=vmem, size = 0x1000, scoped, tag = 'output window, operand 0, single buffered']
    #allocation3 [shape = 's32[1]{0}', space=sflag, size = 0x4, scoped, tag = 'scoped memory for tpu_custom_call.1']
    %9 = vsyncpa [#allocation3], 0
    // Predicated region
    $region2: #{tpu_custom_call.1} parent=1 // pred_check
      _
    $region3: #{tpu_custom_call.1} parent=1 // pred_check_branch
      %11 = sbr.rel (0) target = $region5
    $region4: #{tpu_custom_call.1} parent=1 // pred_region
      _
    $region5: #{tpu_custom_call.1} parent=1 // pred_fallthru
      _
    // Predicated region
    $region6: #{tpu_custom_call.1} parent=1 // pred_check
      _
    $region7: #{tpu_custom_call.1} parent=1 // pred_check_branch
      %13 = sbr.rel (0) target = $region9
    $region8: #{tpu_custom_call.1} parent=1 // pred_region
      _
    $region9: #{tpu_custom_call.1} parent=1 // pred_fallthru
      _
    // Predicated region
    $region10: #{tpu_custom_call.1} parent=1 // pred_check
      _
    $region11: #{tpu_custom_call.1} parent=1 // pred_check_branch
      %15 = sbr.rel (0) target = $region13
    $region12: #{tpu_custom_call.1} parent=1 // pred_region
      _
    $region13: #{tpu_custom_call.1} parent=1 // pred_fallthru
      _
    // Predicated region
    $region14: #{tpu_custom_call.1} parent=1 // pred_check
      _
    $region15: #{tpu_custom_call.1} parent=1 // pred_check_branch
      %17 = sbr.rel (0) target = $region17
    $region16: #{tpu_custom_call.1} parent=1 // pred_region
      _
    $region17: #{tpu_custom_call.1} parent=1 // pred_fallthru
      _
    %v18 = vld [vmem:[%s0] sm:$0xff]
    %v19 = vld [vmem:[%s1] sm:$0xff]
    %v20 = vld [vmem:[%s2] sm:$0xff]
    %v21 = vld [vmem:[%s3] sm:$0xff]
    %s22 = smul.u32 0, 8
    %v23 = vlaneseq
    %v24 = vshrl.u32 %v23, 7
    %v25 = vstv %s22
    %v26 = vadd.s32 %v25, %v24
    %vm27 = vcmp.lt.s32.totalorder %v26, 8
    %v28 = vlaneseq
    %v29 = vand.u32 %v28, 127
    %30 = vset.pattern.permute.xlu0 0
    %31 = vperm.xlu0 %30, %v19
    %v32 = vpop.permute.xlu0 %31
    %vm33 = vcmp.eq.s32.totalorder %v29, %v32
    %v34 = vsel %vm33, %v18, 0.0
    %vm35 = vcmask 130048
    %v36 = vsel %vm35, %v34, 0.0
    %37 = vadd.xlane.f32.xlu0 %v36
    %v38 = vpop.xlane.xlu0 %37
    %v39 = vsel %vm35, %v18, -inf
    %40 = vmax.xlane.f32.xlu0 %v39
    %v41 = vpop.xlane.xlu0 %40
    %v42 = vsub.f32 %v18, %v41
    %v43 = vsub.f32 %v38, %v41
    %v44 = vmul.f32 %v42, 1.442695
    %v45 = vpow.pop %v44
    %v46 = vsel %vm35, %v45, 0.0
    %47 = vadd.xlane.f32.xlu0 %v46
    %v48 = vpop.xlane.xlu0 %47
    %v49 = vlog2.pop %v48
    %v50 = vmul.f32 %v49, 0.6931472
    %v51 = vsub.f32 %v50, %v43
    %v52 = vmul.f32 %v20, %v51
    %v53 = vsub.f32 0.0, %v52
    %v54 = vmul.f32 %v53, 1.442695
    %v55 = vpow.pop %v54
    %v56 = vsub.f32 1.0, %v55
    %v57 = vmul.f32 %v56, %v56
    %v58 = vmul.f32 %v57, %v52
    %v59 = vmul.f32 %v45, %v45
    %v60 = vmul.f32 %v59, %v59
    %v61 = vmul.f32 %v45, %v60
    %v62 = vsel %vm33, 0.0, %v61
    %v63 = vsel %vm35, %v62, 0.0
    %64 = vadd.xlane.f32.xlu0 %v63
    %v65 = vpop.xlane.xlu0 %64
    %v66 = vsub.f32 %v43, %v21
    %v67 = vmul.f32 %v66, 5.0
    %v68 = vmul.f32 %v67, 1.442695
    %v69 = vpow.pop %v68
    %v70 = vadd.f32 %v65, %v69
    %v71 = vlog2.pop %v70
    %v72 = vmul.f32 %v71, 0.6931472
    %v73 = vsub.f32 %v72, %v67
    %v74 = vsel %vm27, %v58, 0.0
    %vm75 = vcmask 7168
    %v76 = vsel %vm75, %v74, 0.0
    %77 = vadd.xlane.f32.xlu0 %v76
    %v78 = vpop.xlane.xlu0 %77
    %v79 = vrot.slane %v78, 4
    %v80 = vadd.f32 %v78, %v79
    %v81 = vrot.slane %v80, 2
    %v82 = vadd.f32 %v80, %v81
    %v83 = vrot.slane %v82, 1
    %v84 = vadd.f32 %v82, %v83
    %s85 = vtos %v84
    %v86 = vsel %vm27, %v73, 0.0
    %v87 = vsel %vm75, %v86, 0.0
    %88 = vadd.xlane.f32.xlu0 %v87
    %v89 = vpop.xlane.xlu0 %88
    %v90 = vrot.slane %v89, 4
    %v91 = vadd.f32 %v89, %v90
    %v92 = vrot.slane %v91, 2
    %v93 = vadd.f32 %v91, %v92
    %v94 = vrot.slane %v93, 1
    %v95 = vadd.f32 %v93, %v94
    %s96 = vtos %v95
    %vm97 = vcmp.eq.s32.totalorder %v24, 0
    %vm98 = vcmp.eq.s32.totalorder %v29, 0
    %vm99 = vmand %vm97, %vm98
    %vm100 = vcmp.eq.s32.totalorder %v29, 1
    %vm101 = vmand %vm97, %vm100
    %v102 = vstv %s96
    %v103 = vsel %vm101, %v102, 0.0
    %v104 = vstv %s85
    %v105 = vsel %vm99, %v104, %v103
    %106 = vst [vmem:[#allocation2] sm:$0xff] %v105
    // Predicated region
    $region18: #{tpu_custom_call.1} parent=1 // pred_check
      _
    $region19: #{tpu_custom_call.1} parent=1 // pred_check_branch
      %108 = sbr.rel (0) target = $region21
    $region20: #{tpu_custom_call.1} parent=1 // pred_region
      %s110 = ssub.s32 128, 128
      %111 = vsyncadd [#allocation3], %s110
      %s113 = sshll.u32 [#allocation2], 4
      %s114 = int_to_ptr.vmem [resolvable:$true] %s113
      %116 = dma.vmem_to_hbm [thread:$0]  %s114, 128, %s4, [#allocation3]
    $region21: #{tpu_custom_call.1} parent=1 // pred_fallthru
      _
    // Predicated region
    $region22: #{tpu_custom_call.1} parent=1 // pred_check
      _
    $region23: #{tpu_custom_call.1} parent=1 // pred_check_branch
      %118 = sbr.rel (0) target = $region25
    $region24: #{tpu_custom_call.1} parent=1 // pred_region
      %119 = dma.done [#allocation3], 128
    $region25: #{tpu_custom_call.1} parent=1 // pred_fallthru
      _
    %120 = vsyncpa [#allocation3], 1

</llo_original>
